<compile_context>
chip_gen: v5e
topology: v5e:2x2
jax: 0.10.0
libtpu: 0.0.40
codegen_flags: <defaults>
</compile_context>

<pallas_src>
import functools

import jax
import jax.numpy as jnp
from jax.experimental import pallas as pl
from jax.experimental.pallas import tpu as pltpu

INPUT_SIZE = 100
HIDDEN_SIZE = 256
NUM_CLASSES = 256
BN_EPS = 1e-5

K_PAD = 128      # input features zero-padded 100 -> 128 (full lane tile)
SUBLANE = 8

_VMEM_LIMIT = 32 * 1024 * 1024  # explicit, v7x-safe scoped-VMEM budget


def _round_up(n, m):
    return (n + m - 1) // m * m


# --------------------------------------------------------------------------- #
# Pass 1: fc1 (bias dropped, cancelled by bn1) + bn1 batch statistics.
# --------------------------------------------------------------------------- #
def _fc1_stats_kernel(x_ref, w1_ref, h_ref, sum1_ref, sumsq1_ref):
    @pl.when(pl.program_id(0) == 0)
    def _():
        sum1_ref[...] = jnp.zeros_like(sum1_ref)
        sumsq1_ref[...] = jnp.zeros_like(sumsq1_ref)

    # x/w1 already in compute dtype; accumulate on the MXU in f32.
    h = jnp.dot(x_ref[...], w1_ref[...], preferred_element_type=jnp.float32)
    h_ref[...] = h

    # Padded batch rows are exactly zero (zero input rows, no bias), so they
    # contribute nothing here; the mean divides by the true batch size later.
    sum1_ref[...] += jnp.sum(h, axis=0, keepdims=True)
    sumsq1_ref[...] += jnp.sum(h * h, axis=0, keepdims=True)


# --------------------------------------------------------------------------- #
# Pass 2: folded bn1 + relu + fc2 (bias dropped) + bn2 batch statistics.
# --------------------------------------------------------------------------- #
def _bn1_relu_fc2_stats_kernel(h_ref, sum1_ref, sumsq1_ref, g1_ref, beta1_ref,
                               w2_ref, o_ref, sum2_ref, sumsq2_ref,
                               *, inv_batch, batch, block_rows, needs_mask,
                               compute_dtype):
    @pl.when(pl.program_id(0) == 0)
    def _():
        sum2_ref[...] = jnp.zeros_like(sum2_ref)
        sumsq2_ref[...] = jnp.zeros_like(sumsq2_ref)

    # Fold bn1 into one per-feature scale/shift (f32 element-wise math).
    mean1 = sum1_ref[...] * inv_batch
    var1 = sumsq1_ref[...] * inv_batch - mean1 * mean1
    s1 = g1_ref[...] * jax.lax.rsqrt(var1 + BN_EPS)
    t1 = beta1_ref[...] - mean1 * s1

    h = jnp.maximum(h_ref[...] * s1 + t1, 0.0)
    o = jnp.dot(h.astype(compute_dtype), w2_ref[...],
                preferred_element_type=jnp.float32)
    o_ref[...] = o

    if needs_mask:
        # Exclude padded batch rows (which are non-zero after bn1's shift)
        # from the bn2 statistics.
        row = (pl.program_id(0) * block_rows
               + jax.lax.broadcasted_iota(jnp.int32, o.shape, 0))
        om = jnp.where(row < batch, o, 0.0)
    else:
        om = o
    sum2_ref[...] += jnp.sum(om, axis=0, keepdims=True)
    sumsq2_ref[...] += jnp.sum(om * om, axis=0, keepdims=True)


# --------------------------------------------------------------------------- #
# Pass 3: folded bn2.
# --------------------------------------------------------------------------- #
def _bn2_kernel(o_ref, sum2_ref, sumsq2_ref, g2_ref, beta2_ref, out_ref,
                *, inv_batch):
    mean2 = sum2_ref[...] * inv_batch
    var2 = sumsq2_ref[...] * inv_batch - mean2 * mean2
    s2 = g2_ref[...] * jax.lax.rsqrt(var2 + BN_EPS)
    t2 = beta2_ref[...] - mean2 * s2
    out_ref[...] = (o_ref[...] * s2 + t2).astype(out_ref.dtype)


# --------------------------------------------------------------------------- #
# Wrapper
# --------------------------------------------------------------------------- #
def neural_network_forward(x, params, *, compute_dtype=jnp.bfloat16,
                           block_rows=128):
    """x: (B, INPUT_SIZE) float32. Returns (B, NUM_CLASSES) float32."""
    B = x.shape[0]
    assert x.shape[1] == INPUT_SIZE

    tb = min(block_rows, _round_up(B, SUBLANE))   # batch row-tile
    b_pad = _round_up(B, tb)
    nt = b_pad // tb
    f32 = jnp.float32

    # Zero-pad features 100 -> 128 (mathematically a no-op) and the batch to a
    # multiple of the row tile; cast matmul operands to the compute dtype so
    # the weight/input DMAs are already narrow.
    xp = jnp.pad(x, ((0, b_pad - B), (0, K_PAD - INPUT_SIZE))).astype(compute_dtype)
    w1 = jnp.pad(params["w1"], ((0, K_PAD - INPUT_SIZE), (0, 0))).astype(compute_dtype)
    w2 = params["w2"].astype(compute_dtype)
    # b1 / b2 intentionally unused: cancelled exactly by the BN mean subtraction.

    row_spec = lambda f: pl.BlockSpec((tb, f), lambda i: (i, 0))
    full_spec = lambda r, c: pl.BlockSpec((r, c), lambda i: (0, 0))  # resident
    vec_spec = lambda f: full_spec(1, f)

    cp_acc = pltpu.CompilerParams(dimension_semantics=("arbitrary",),
                                  vmem_limit_bytes=_VMEM_LIMIT)
    cp_par = pltpu.CompilerParams(dimension_semantics=("parallel",),
                                  vmem_limit_bytes=_VMEM_LIMIT)

    # ---- pass 1: fc1 + bn1 stats ----
    h_pre, sum1, sumsq1 = pl.pallas_call(
        _fc1_stats_kernel,
        grid=(nt,),
        in_specs=[row_spec(K_PAD), full_spec(K_PAD, HIDDEN_SIZE)],
        out_specs=(row_spec(HIDDEN_SIZE), vec_spec(HIDDEN_SIZE),
                   vec_spec(HIDDEN_SIZE)),
        out_shape=(jax.ShapeDtypeStruct((b_pad, HIDDEN_SIZE), f32),
                   jax.ShapeDtypeStruct((1, HIDDEN_SIZE), f32),
                   jax.ShapeDtypeStruct((1, HIDDEN_SIZE), f32)),
        compiler_params=cp_acc,
    )(xp, w1)

    # ---- pass 2: bn1-fold + relu + fc2 + bn2 stats ----
    kernel_b = functools.partial(
        _bn1_relu_fc2_stats_kernel,
        inv_batch=1.0 / B, batch=B, block_rows=tb,
        needs_mask=(b_pad != B), compute_dtype=compute_dtype)
    o_pre, sum2, sumsq2 = pl.pallas_call(
        kernel_b,
        grid=(nt,),
        in_specs=[row_spec(HIDDEN_SIZE), vec_spec(HIDDEN_SIZE),
                  vec_spec(HIDDEN_SIZE), vec_spec(HIDDEN_SIZE),
                  vec_spec(HIDDEN_SIZE), full_spec(HIDDEN_SIZE, NUM_CLASSES)],
        out_specs=(row_spec(NUM_CLASSES), vec_spec(NUM_CLASSES),
                   vec_spec(NUM_CLASSES)),
        out_shape=(jax.ShapeDtypeStruct((b_pad, NUM_CLASSES), f32),
                   jax.ShapeDtypeStruct((1, NUM_CLASSES), f32),
                   jax.ShapeDtypeStruct((1, NUM_CLASSES), f32)),
        compiler_params=cp_acc,
    )(h_pre, sum1, sumsq1, params["g1"], params["beta1"], w2)

    # ---- pass 3: bn2-fold (batch axis fully parallel -> megacore on v7x) ----
    kernel_c = functools.partial(_bn2_kernel, inv_batch=1.0 / B)
    out = pl.pallas_call(
        kernel_c,
        grid=(nt,),
        in_specs=[row_spec(NUM_CLASSES), vec_spec(NUM_CLASSES),
                  vec_spec(NUM_CLASSES), vec_spec(NUM_CLASSES),
                  vec_spec(NUM_CLASSES)],
        out_specs=row_spec(NUM_CLASSES),
        out_shape=jax.ShapeDtypeStruct((b_pad, NUM_CLASSES), f32),
        compiler_params=cp_par,
    )(o_pre, sum2, sumsq2, params["g2"], params["beta2"])

    return out[:B]


# --------------------------------------------------------------------------- #
# Params / reference (PyTorch-faithful: biases kept, two-pass mean/var)
# --------------------------------------------------------------------------- #
def init_params(key):
    k1, k2, k3, k4 = jax.random.split(key, 4)
    bound1 = 1.0 / (INPUT_SIZE ** 0.5)
    bound2 = 1.0 / (HIDDEN_SIZE ** 0.5)
    return {
        "w1": jax.random.uniform(k1, (INPUT_SIZE, HIDDEN_SIZE), jnp.float32,
                                 -bound1, bound1),
        "b1": jax.random.uniform(k2, (1, HIDDEN_SIZE), jnp.float32, -bound1, bound1),
        "g1": jnp.ones((1, HIDDEN_SIZE), jnp.float32),      # bn1 weight
        "beta1": jnp.zeros((1, HIDDEN_SIZE), jnp.float32),  # bn1 bias
        "w2": jax.random.uniform(k3, (HIDDEN_SIZE, NUM_CLASSES), jnp.float32,
                                 -bound2, bound2),
        "b2": jax.random.uniform(k4, (1, NUM_CLASSES), jnp.float32, -bound2, bound2),
        "g2": jnp.ones((1, NUM_CLASSES), jnp.float32),      # bn2 weight
        "beta2": jnp.zeros((1, NUM_CLASSES), jnp.float32),  # bn2 bias
    }


def _reference(x, p):
    h = x @ p["w1"] + p["b1"]
    m = h.mean(0, keepdims=True)
    v = ((h - m) ** 2).mean(0, keepdims=True)
    h = (h - m) / jnp.sqrt(v + BN_EPS) * p["g1"] + p["beta1"]
    h = jnp.maximum(h, 0.0)
    o = h @ p["w2"] + p["b2"]
    m2 = o.mean(0, keepdims=True)
    v2 = ((o - m2) ** 2).mean(0, keepdims=True)
    return (o - m2) / jnp.sqrt(v2 + BN_EPS) * p["g2"] + p["beta2"]


if __name__ == "__main__":
    key = jax.random.PRNGKey(0)
    kx, kp = jax.random.split(key)
    B = 8
    x = jax.random.normal(kx, (B, INPUT_SIZE), jnp.float32)
    params = init_params(kp)
    ref = _reference(x, params)

    # Full-precision path: must match the f32 reference tightly (also verifies
    # that dropping b1/b2 and folding BN does not change the module semantics).
    fwd_f32 = jax.jit(functools.partial(neural_network_forward,
                                        compute_dtype=jnp.float32))
    out_f32 = jax.block_until_ready(fwd_f32(x, params))
    assert out_f32.shape == (B, NUM_CLASSES)
    assert jnp.allclose(out_f32, ref, atol=2e-4, rtol=2e-4), "f32 mismatch vs reference"

    # bf16-MXU perf path (v6e/v7x default): f32 accumulation, looser tolerance.
    fwd_bf16 = jax.jit(functools.partial(neural_network_forward,
                                         compute_dtype=jnp.bfloat16))
    out_bf16 = jax.block_until_ready(fwd_bf16(x, params))
    assert out_bf16.shape == (B, NUM_CLASSES)
    assert bool(jnp.all(jnp.isfinite(out_bf16)))
    assert jnp.allclose(out_bf16, ref, atol=1e-1, rtol=1e-1), "bf16 mismatch vs reference"

    print("KERNEL_OK")
</pallas_src>

<mosaic_0001>
module attributes {stable_mosaic.version = 11 : i64} {
  func.func @_fc1_stats_kernel(%arg0: i32, %arg1: memref<8x128xf32, #tpu.memory_space<vmem>>, %arg2: memref<128x256xf32, #tpu.memory_space<vmem>>, %arg3: memref<8x256xf32, #tpu.memory_space<vmem>>, %arg4: memref<1x256xf32, #tpu.memory_space<vmem>>, %arg5: memref<1x256xf32, #tpu.memory_space<vmem>>) attributes {dimension_semantics = [#tpu.dimension_semantics<arbitrary>], iteration_bounds = array<i64: 1>, scalar_prefetch = 0 : i64, scratch_operands = 0 : i64, tpu.core_type = #tpu.core_type<tc>, window_params = [{transform_indices = @transform_0, window_bounds = array<i64: 8, 128>}, {pipeline_mode = #tpu.pipeline_mode<synchronous>, transform_indices = @transform_1, window_bounds = array<i64: 128, 256>}, {transform_indices = @transform_2, window_bounds = array<i64: 8, 256>}, {pipeline_mode = #tpu.pipeline_mode<synchronous>, transform_indices = @transform_3, window_bounds = array<i64: 1, 256>}, {pipeline_mode = #tpu.pipeline_mode<synchronous>, transform_indices = @transform_4, window_bounds = array<i64: 1, 256>}]} {
    %c0_i32 = arith.constant 0 : i32
    %0 = arith.cmpi eq, %arg0, %c0_i32 : i32
    %1 = arith.extui %0 : i1 to i32
    %c0_i32_0 = arith.constant 0 : i32
    %2 = arith.cmpi ne, %1, %c0_i32_0 : i32
    scf.if %2 {
      %cst_16 = arith.constant 0.000000e+00 : f32
      %18 = vector.broadcast %cst_16 : f32 to vector<1x256xf32>
      %c0_17 = arith.constant 0 : index
      %c0_18 = arith.constant 0 : index
      %19 = vector.load %arg4[%c0_17, %c0_18] : memref<1x256xf32, #tpu.memory_space<vmem>>, vector<1x256xf32>
      tpu.vector_store %arg4[%c0_17, %c0_18], %18 {strides = array<i32>} : memref<1x256xf32, #tpu.memory_space<vmem>>, vector<1x256xf32>,
      %cst_19 = arith.constant 0.000000e+00 : f32
      %20 = vector.broadcast %cst_19 : f32 to vector<1x256xf32>
      %c0_20 = arith.constant 0 : index
      %c0_21 = arith.constant 0 : index
      %21 = vector.load %arg5[%c0_20, %c0_21] : memref<1x256xf32, #tpu.memory_space<vmem>>, vector<1x256xf32>
      tpu.vector_store %arg5[%c0_20, %c0_21], %20 {strides = array<i32>} : memref<1x256xf32, #tpu.memory_space<vmem>>, vector<1x256xf32>,
    } else {
    }
    %c0 = arith.constant 0 : index
    %c0_1 = arith.constant 0 : index
    %3 = vector.load %arg1[%c0, %c0_1] : memref<8x128xf32, #tpu.memory_space<vmem>>, vector<8x128xf32>
    %c0_2 = arith.constant 0 : index
    %c0_3 = arith.constant 0 : index
    %4 = vector.load %arg2[%c0_2, %c0_3] : memref<128x256xf32, #tpu.memory_space<vmem>>, vector<128x256xf32>
    %cst = arith.constant dense<0.000000e+00> : vector<8x256xf32>
    %5 = tpu.matmul %3, %4, %cst {dimension_numbers = #tpu.dot_dimension_numbers<[1], [0], [0], [1], [0, 0, 1, 1], [], []>} : vector<8x128xf32>, vector<128x256xf32>, vector<8x256xf32> -> vector<8x256xf32>
    %c0_4 = arith.constant 0 : index
    %c0_5 = arith.constant 0 : index
    %6 = vector.load %arg3[%c0_4, %c0_5] : memref<8x256xf32, #tpu.memory_space<vmem>>, vector<8x256xf32>
    tpu.vector_store %arg3[%c0_4, %c0_5], %5 {strides = array<i32>} : memref<8x256xf32, #tpu.memory_space<vmem>>, vector<8x256xf32>,
    %c0_6 = arith.constant 0 : index
    %c0_7 = arith.constant 0 : index
    %7 = vector.load %arg4[%c0_6, %c0_7] : memref<1x256xf32, #tpu.memory_space<vmem>>, vector<1x256xf32>
    %cst_8 = arith.constant dense<0.000000e+00> : vector<256xf32>
    %8 = vector.multi_reduction <add>, %5, %cst_8 [0] : vector<8x256xf32> to vector<256xf32>
    %9 = vector.shape_cast %8 : vector<256xf32> to vector<1x256xf32>
    %10 = arith.addf %7, %9 : vector<1x256xf32>
    %c0_9 = arith.constant 0 : index
    %c0_10 = arith.constant 0 : index
    %11 = vector.load %arg4[%c0_9, %c0_10] : memref<1x256xf32, #tpu.memory_space<vmem>>, vector<1x256xf32>
    tpu.vector_store %arg4[%c0_9, %c0_10], %10 {strides = array<i32>} : memref<1x256xf32, #tpu.memory_space<vmem>>, vector<1x256xf32>,
    %c0_11 = arith.constant 0 : index
    %c0_12 = arith.constant 0 : index
    %12 = vector.load %arg5[%c0_11, %c0_12] : memref<1x256xf32, #tpu.memory_space<vmem>>, vector<1x256xf32>
    %13 = arith.mulf %5, %5 : vector<8x256xf32>
    %cst_13 = arith.constant dense<0.000000e+00> : vector<256xf32>
    %14 = vector.multi_reduction <add>, %13, %cst_13 [0] : vector<8x256xf32> to vector<256xf32>
    %15 = vector.shape_cast %14 : vector<256xf32> to vector<1x256xf32>
    %16 = arith.addf %12, %15 : vector<1x256xf32>
    %c0_14 = arith.constant 0 : index
    %c0_15 = arith.constant 0 : index
    %17 = vector.load %arg5[%c0_14, %c0_15] : memref<1x256xf32, #tpu.memory_space<vmem>>, vector<1x256xf32>
    tpu.vector_store %arg5[%c0_14, %c0_15], %16 {strides = array<i32>} : memref<1x256xf32, #tpu.memory_space<vmem>>, vector<1x256xf32>,
    return
  }
  func.func @transform_0(%arg0: i32) -> (i32, i32) {
    %c0_i32 = arith.constant 0 : i32
    %c0_i32_0 = arith.constant 0 : i32
    return %arg0, %c0_i32 : i32, i32
  }
  func.func @transform_1(%arg0: i32) -> (i32, i32) {
    %c0_i32 = arith.constant 0 : i32
    %c0_i32_0 = arith.constant 0 : i32
    %c0_i32_1 = arith.constant 0 : i32
    return %c0_i32, %c0_i32_0 : i32, i32
  }
  func.func @transform_2(%arg0: i32) -> (i32, i32) {
    %c0_i32 = arith.constant 0 : i32
    %c0_i32_0 = arith.constant 0 : i32
    return %arg0, %c0_i32 : i32, i32
  }
  func.func @transform_3(%arg0: i32) -> (i32, i32) {
    %c0_i32 = arith.constant 0 : i32
    %c0_i32_0 = arith.constant 0 : i32
    %c0_i32_1 = arith.constant 0 : i32
    return %c0_i32, %c0_i32_0 : i32, i32
  }
  func.func @transform_4(%arg0: i32) -> (i32, i32) {
    %c0_i32 = arith.constant 0 : i32
    %c0_i32_0 = arith.constant 0 : i32
    %c0_i32_1 = arith.constant 0 : i32
    return %c0_i32, %c0_i32_0 : i32, i32
  }
}

module attributes {stable_mosaic.version = 11 : i64} {
  func.func @_bn1_relu_fc2_stats_kernel(%arg0: i32, %arg1: memref<8x256xf32, #tpu.memory_space<vmem>>, %arg2: memref<1x256xf32, #tpu.memory_space<vmem>>, %arg3: memref<1x256xf32, #tpu.memory_space<vmem>>, %arg4: memref<1x256xf32, #tpu.memory_space<vmem>>, %arg5: memref<1x256xf32, #tpu.memory_space<vmem>>, %arg6: memref<256x256xf32, #tpu.memory_space<vmem>>, %arg7: memref<8x256xf32, #tpu.memory_space<vmem>>, %arg8: memref<1x256xf32, #tpu.memory_space<vmem>>, %arg9: memref<1x256xf32, #tpu.memory_space<vmem>>) attributes {dimension_semantics = [#tpu.dimension_semantics<arbitrary>], iteration_bounds = array<i64: 1>, scalar_prefetch = 0 : i64, scratch_operands = 0 : i64, tpu.core_type = #tpu.core_type<tc>, window_params = [{transform_indices = @transform_0, window_bounds = array<i64: 8, 256>}, {pipeline_mode = #tpu.pipeline_mode<synchronous>, transform_indices = @transform_1, window_bounds = array<i64: 1, 256>}, {pipeline_mode = #tpu.pipeline_mode<synchronous>, transform_indices = @transform_2, window_bounds = array<i64: 1, 256>}, {pipeline_mode = #tpu.pipeline_mode<synchronous>, transform_indices = @transform_3, window_bounds = array<i64: 1, 256>}, {pipeline_mode = #tpu.pipeline_mode<synchronous>, transform_indices = @transform_4, window_bounds = array<i64: 1, 256>}, {pipeline_mode = #tpu.pipeline_mode<synchronous>, transform_indices = @transform_5, window_bounds = array<i64: 256, 256>}, {transform_indices = @transform_6, window_bounds = array<i64: 8, 256>}, {pipeline_mode = #tpu.pipeline_mode<synchronous>, transform_indices = @transform_7, window_bounds = array<i64: 1, 256>}, {pipeline_mode = #tpu.pipeline_mode<synchronous>, transform_indices = @transform_8, window_bounds = array<i64: 1, 256>}]} {
    %c0_i32 = arith.constant 0 : i32
    %0 = arith.cmpi eq, %arg0, %c0_i32 : i32
    %1 = arith.extui %0 : i1 to i32
    %c0_i32_0 = arith.constant 0 : i32
    %2 = arith.cmpi ne, %1, %c0_i32_0 : i32
    scf.if %2 {
      %cst_28 = arith.constant 0.000000e+00 : f32
      %40 = vector.broadcast %cst_28 : f32 to vector<1x256xf32>
      %c0_29 = arith.constant 0 : index
      %c0_30 = arith.constant 0 : index
      %41 = vector.load %arg8[%c0_29, %c0_30] : memref<1x256xf32, #tpu.memory_space<vmem>>, vector<1x256xf32>
      tpu.vector_store %arg8[%c0_29, %c0_30], %40 {strides = array<i32>} : memref<1x256xf32, #tpu.memory_space<vmem>>, vector<1x256xf32>,
      %cst_31 = arith.constant 0.000000e+00 : f32
      %42 = vector.broadcast %cst_31 : f32 to vector<1x256xf32>
      %c0_32 = arith.constant 0 : index
      %c0_33 = arith.constant 0 : index
      %43 = vector.load %arg9[%c0_32, %c0_33] : memref<1x256xf32, #tpu.memory_space<vmem>>, vector<1x256xf32>
      tpu.vector_store %arg9[%c0_32, %c0_33], %42 {strides = array<i32>} : memref<1x256xf32, #tpu.memory_space<vmem>>, vector<1x256xf32>,
    } else {
    }
    %c0 = arith.constant 0 : index
    %c0_1 = arith.constant 0 : index
    %3 = vector.load %arg2[%c0, %c0_1] : memref<1x256xf32, #tpu.memory_space<vmem>>, vector<1x256xf32>
    %cst = arith.constant 1.250000e-01 : f32
    %4 = vector.broadcast %cst : f32 to vector<1x256xf32>
    %5 = arith.mulf %3, %4 : vector<1x256xf32>
    %c0_2 = arith.constant 0 : index
    %c0_3 = arith.constant 0 : index
    %6 = vector.load %arg3[%c0_2, %c0_3] : memref<1x256xf32, #tpu.memory_space<vmem>>, vector<1x256xf32>
    %cst_4 = arith.constant 1.250000e-01 : f32
    %7 = vector.broadcast %cst_4 : f32 to vector<1x256xf32>
    %8 = arith.mulf %6, %7 : vector<1x256xf32>
    %9 = arith.mulf %5, %5 : vector<1x256xf32>
    %10 = arith.subf %8, %9 : vector<1x256xf32>
    %c0_5 = arith.constant 0 : index
    %c0_6 = arith.constant 0 : index
    %11 = vector.load %arg4[%c0_5, %c0_6] : memref<1x256xf32, #tpu.memory_space<vmem>>, vector<1x256xf32>
    %cst_7 = arith.constant 9.99999974E-6 : f32
    %12 = vector.broadcast %cst_7 : f32 to vector<1x256xf32>
    %13 = arith.addf %10, %12 : vector<1x256xf32>
    %14 = math.rsqrt %13 : vector<1x256xf32>
    %15 = arith.mulf %11, %14 : vector<1x256xf32>
    %c0_8 = arith.constant 0 : index
    %c0_9 = arith.constant 0 : index
    %16 = vector.load %arg5[%c0_8, %c0_9] : memref<1x256xf32, #tpu.memory_space<vmem>>, vector<1x256xf32>
    %17 = arith.mulf %5, %15 : vector<1x256xf32>
    %18 = arith.subf %16, %17 : vector<1x256xf32>
    %c0_10 = arith.constant 0 : index
    %c0_11 = arith.constant 0 : index
    %19 = vector.load %arg1[%c0_10, %c0_11] : memref<8x256xf32, #tpu.memory_space<vmem>>, vector<8x256xf32>
    %20 = vector.broadcast %15 : vector<1x256xf32> to vector<8x256xf32>
    %21 = arith.mulf %19, %20 : vector<8x256xf32>
    %22 = vector.broadcast %18 : vector<1x256xf32> to vector<8x256xf32>
    %23 = arith.addf %21, %22 : vector<8x256xf32>
    %cst_12 = arith.constant 0.000000e+00 : f32
    %24 = vector.broadcast %cst_12 : f32 to vector<8x256xf32>
    %25 = arith.maximumf %23, %24 : vector<8x256xf32>
    %c0_13 = arith.constant 0 : index
    %c0_14 = arith.constant 0 : index
    %26 = vector.load %arg6[%c0_13, %c0_14] : memref<256x256xf32, #tpu.memory_space<vmem>>, vector<256x256xf32>
    %cst_15 = arith.constant dense<0.000000e+00> : vector<8x256xf32>
    %27 = tpu.matmul %25, %26, %cst_15 {dimension_numbers = #tpu.dot_dimension_numbers<[1], [0], [0], [1], [0, 0, 1, 1], [], []>} : vector<8x256xf32>, vector<256x256xf32>, vector<8x256xf32> -> vector<8x256xf32>
    %c0_16 = arith.constant 0 : index
    %c0_17 = arith.constant 0 : index
    %28 = vector.load %arg7[%c0_16, %c0_17] : memref<8x256xf32, #tpu.memory_space<vmem>>, vector<8x256xf32>
    tpu.vector_store %arg7[%c0_16, %c0_17], %27 {strides = array<i32>} : memref<8x256xf32, #tpu.memory_space<vmem>>, vector<8x256xf32>,
    %c0_18 = arith.constant 0 : index
    %c0_19 = arith.constant 0 : index
    %29 = vector.load %arg8[%c0_18, %c0_19] : memref<1x256xf32, #tpu.memory_space<vmem>>, vector<1x256xf32>
    %cst_20 = arith.constant dense<0.000000e+00> : vector<256xf32>
    %30 = vector.multi_reduction <add>, %27, %cst_20 [0] : vector<8x256xf32> to vector<256xf32>
    %31 = vector.shape_cast %30 : vector<256xf32> to vector<1x256xf32>
    %32 = arith.addf %29, %31 : vector<1x256xf32>
    %c0_21 = arith.constant 0 : index
    %c0_22 = arith.constant 0 : index
    %33 = vector.load %arg8[%c0_21, %c0_22] : memref<1x256xf32, #tpu.memory_space<vmem>>, vector<1x256xf32>
    tpu.vector_store %arg8[%c0_21, %c0_22], %32 {strides = array<i32>} : memref<1x256xf32, #tpu.memory_space<vmem>>, vector<1x256xf32>,
    %c0_23 = arith.constant 0 : index
    %c0_24 = arith.constant 0 : index
    %34 = vector.load %arg9[%c0_23, %c0_24] : memref<1x256xf32, #tpu.memory_space<vmem>>, vector<1x256xf32>
    %35 = arith.mulf %27, %27 : vector<8x256xf32>
    %cst_25 = arith.constant dense<0.000000e+00> : vector<256xf32>
    %36 = vector.multi_reduction <add>, %35, %cst_25 [0] : vector<8x256xf32> to vector<256xf32>
    %37 = vector.shape_cast %36 : vector<256xf32> to vector<1x256xf32>
    %38 = arith.addf %34, %37 : vector<1x256xf32>
    %c0_26 = arith.constant 0 : index
    %c0_27 = arith.constant 0 : index
    %39 = vector.load %arg9[%c0_26, %c0_27] : memref<1x256xf32, #tpu.memory_space<vmem>>, vector<1x256xf32>
    tpu.vector_store %arg9[%c0_26, %c0_27], %38 {strides = array<i32>} : memref<1x256xf32, #tpu.memory_space<vmem>>, vector<1x256xf32>,
    return
  }
  func.func @transform_0(%arg0: i32) -> (i32, i32) {
    %c0_i32 = arith.constant 0 : i32
    %c0_i32_0 = arith.constant 0 : i32
    return %arg0, %c0_i32 : i32, i32
  }
  func.func @transform_1(%arg0: i32) -> (i32, i32) {
    %c0_i32 = arith.constant 0 : i32
    %c0_i32_0 = arith.constant 0 : i32
    %c0_i32_1 = arith.constant 0 : i32
    return %c0_i32, %c0_i32_0 : i32, i32
  }
  func.func @transform_2(%arg0: i32) -> (i32, i32) {
    %c0_i32 = arith.constant 0 : i32
    %c0_i32_0 = arith.constant 0 : i32
    %c0_i32_1 = arith.constant 0 : i32
    return %c0_i32, %c0_i32_0 : i32, i32
  }
  func.func @transform_3(%arg0: i32) -> (i32, i32) {
    %c0_i32 = arith.constant 0 : i32
    %c0_i32_0 = arith.constant 0 : i32
    %c0_i32_1 = arith.constant 0 : i32
    return %c0_i32, %c0_i32_0 : i32, i32
  }
  func.func @transform_4(%arg0: i32) -> (i32, i32) {
    %c0_i32 = arith.constant 0 : i32
    %c0_i32_0 = arith.constant 0 : i32
    %c0_i32_1 = arith.constant 0 : i32
    return %c0_i32, %c0_i32_0 : i32, i32
  }
  func.func @transform_5(%arg0: i32) -> (i32, i32) {
    %c0_i32 = arith.constant 0 : i32
    %c0_i32_0 = arith.constant 0 : i32
    %c0_i32_1 = arith.constant 0 : i32
    return %c0_i32, %c0_i32_0 : i32, i32
  }
  func.func @transform_6(%arg0: i32) -> (i32, i32) {
    %c0_i32 = arith.constant 0 : i32
    %c0_i32_0 = arith.constant 0 : i32
    return %arg0, %c0_i32 : i32, i32
  }
  func.func @transform_7(%arg0: i32) -> (i32, i32) {
    %c0_i32 = arith.constant 0 : i32
    %c0_i32_0 = arith.constant 0 : i32
    %c0_i32_1 = arith.constant 0 : i32
    return %c0_i32, %c0_i32_0 : i32, i32
  }
  func.func @transform_8(%arg0: i32) -> (i32, i32) {
    %c0_i32 = arith.constant 0 : i32
    %c0_i32_0 = arith.constant 0 : i32
    %c0_i32_1 = arith.constant 0 : i32
    return %c0_i32, %c0_i32_0 : i32, i32
  }
}

module attributes {stable_mosaic.version = 11 : i64} {
  func.func @_bn2_kernel(%arg0: i32, %arg1: memref<8x256xf32, #tpu.memory_space<vmem>>, %arg2: memref<1x256xf32, #tpu.memory_space<vmem>>, %arg3: memref<1x256xf32, #tpu.memory_space<vmem>>, %arg4: memref<1x256xf32, #tpu.memory_space<vmem>>, %arg5: memref<1x256xf32, #tpu.memory_space<vmem>>, %arg6: memref<8x256xf32, #tpu.memory_space<vmem>>) attributes {dimension_semantics = [#tpu.dimension_semantics<parallel>], iteration_bounds = array<i64: 1>, scalar_prefetch = 0 : i64, scratch_operands = 0 : i64, tpu.core_type = #tpu.core_type<tc>, window_params = [{transform_indices = @transform_0, window_bounds = array<i64: 8, 256>}, {pipeline_mode = #tpu.pipeline_mode<synchronous>, transform_indices = @transform_1, window_bounds = array<i64: 1, 256>}, {pipeline_mode = #tpu.pipeline_mode<synchronous>, transform_indices = @transform_2, window_bounds = array<i64: 1, 256>}, {pipeline_mode = #tpu.pipeline_mode<synchronous>, transform_indices = @transform_3, window_bounds = array<i64: 1, 256>}, {pipeline_mode = #tpu.pipeline_mode<synchronous>, transform_indices = @transform_4, window_bounds = array<i64: 1, 256>}, {transform_indices = @transform_5, window_bounds = array<i64: 8, 256>}]} {
    %c0 = arith.constant 0 : index
    %c0_0 = arith.constant 0 : index
    %0 = vector.load %arg2[%c0, %c0_0] : memref<1x256xf32, #tpu.memory_space<vmem>>, vector<1x256xf32>
    %cst = arith.constant 1.250000e-01 : f32
    %1 = vector.broadcast %cst : f32 to vector<1x256xf32>
    %2 = arith.mulf %0, %1 : vector<1x256xf32>
    %c0_1 = arith.constant 0 : index
    %c0_2 = arith.constant 0 : index
    %3 = vector.load %arg3[%c0_1, %c0_2] : memref<1x256xf32, #tpu.memory_space<vmem>>, vector<1x256xf32>
    %cst_3 = arith.constant 1.250000e-01 : f32
    %4 = vector.broadcast %cst_3 : f32 to vector<1x256xf32>
    %5 = arith.mulf %3, %4 : vector<1x256xf32>
    %6 = arith.mulf %2, %2 : vector<1x256xf32>
    %7 = arith.subf %5, %6 : vector<1x256xf32>
    %c0_4 = arith.constant 0 : index
    %c0_5 = arith.constant 0 : index
    %8 = vector.load %arg4[%c0_4, %c0_5] : memref<1x256xf32, #tpu.memory_space<vmem>>, vector<1x256xf32>
    %cst_6 = arith.constant 9.99999974E-6 : f32
    %9 = vector.broadcast %cst_6 : f32 to vector<1x256xf32>
    %10 = arith.addf %7, %9 : vector<1x256xf32>
    %11 = math.rsqrt %10 : vector<1x256xf32>
    %12 = arith.mulf %8, %11 : vector<1x256xf32>
    %c0_7 = arith.constant 0 : index
    %c0_8 = arith.constant 0 : index
    %13 = vector.load %arg5[%c0_7, %c0_8] : memref<1x256xf32, #tpu.memory_space<vmem>>, vector<1x256xf32>
    %14 = arith.mulf %2, %12 : vector<1x256xf32>
    %15 = arith.subf %13, %14 : vector<1x256xf32>
    %c0_9 = arith.constant 0 : index
    %c0_10 = arith.constant 0 : index
    %16 = vector.load %arg1[%c0_9, %c0_10] : memref<8x256xf32, #tpu.memory_space<vmem>>, vector<8x256xf32>
    %17 = vector.broadcast %12 : vector<1x256xf32> to vector<8x256xf32>
    %18 = arith.mulf %16, %17 : vector<8x256xf32>
    %19 = vector.broadcast %15 : vector<1x256xf32> to vector<8x256xf32>
    %20 = arith.addf %18, %19 : vector<8x256xf32>
    %c0_11 = arith.constant 0 : index
    %c0_12 = arith.constant 0 : index
    %21 = vector.load %arg6[%c0_11, %c0_12] : memref<8x256xf32, #tpu.memory_space<vmem>>, vector<8x256xf32>
    tpu.vector_store %arg6[%c0_11, %c0_12], %20 {strides = array<i32>} : memref<8x256xf32, #tpu.memory_space<vmem>>, vector<8x256xf32>,
    return
  }
  func.func @transform_0(%arg0: i32) -> (i32, i32) {
    %c0_i32 = arith.constant 0 : i32
    %c0_i32_0 = arith.constant 0 : i32
    return %arg0, %c0_i32 : i32, i32
  }
  func.func @transform_1(%arg0: i32) -> (i32, i32) {
    %c0_i32 = arith.constant 0 : i32
    %c0_i32_0 = arith.constant 0 : i32
    %c0_i32_1 = arith.constant 0 : i32
    return %c0_i32, %c0_i32_0 : i32, i32
  }
  func.func @transform_2(%arg0: i32) -> (i32, i32) {
    %c0_i32 = arith.constant 0 : i32
    %c0_i32_0 = arith.constant 0 : i32
    %c0_i32_1 = arith.constant 0 : i32
    return %c0_i32, %c0_i32_0 : i32, i32
  }
  func.func @transform_3(%arg0: i32) -> (i32, i32) {
    %c0_i32 = arith.constant 0 : i32
    %c0_i32_0 = arith.constant 0 : i32
    %c0_i32_1 = arith.constant 0 : i32
    return %c0_i32, %c0_i32_0 : i32, i32
  }
  func.func @transform_4(%arg0: i32) -> (i32, i32) {
    %c0_i32 = arith.constant 0 : i32
    %c0_i32_0 = arith.constant 0 : i32
    %c0_i32_1 = arith.constant 0 : i32
    return %c0_i32, %c0_i32_0 : i32, i32
  }
  func.func @transform_5(%arg0: i32) -> (i32, i32) {
    %c0_i32 = arith.constant 0 : i32
    %c0_i32_0 = arith.constant 0 : i32
    return %arg0, %c0_i32 : i32, i32
  }
}

</mosaic_0001>

<llo_original>
// kernel: neural_network_forward.5
$region0: #{neural_network_forward.5}
  #allocation0 [shape = 'u32[]', space=smem, size = 0x4, offset = 0x4, fixed_abs, tag = 'smem constant byte address 0x4 - core index']
  #allocation1 [shape = 'u32[72,128]{1,0:T(1,128)}', space=vmem, size = 0x9000, scoped, tag = 'internal scratch']
  %s0 = inlined_call_operand.vmem [shape: f32[8,256], index: 0, kind: input, shape index: {}]
  %s1 = inlined_call_operand.vmem [shape: f32[1,256], index: 1, kind: input, shape index: {}]
  %s2 = inlined_call_operand.vmem [shape: f32[1,256], index: 2, kind: input, shape index: {}]
  %s3 = inlined_call_operand.vmem [shape: f32[1,256], index: 3, kind: input, shape index: {}]
  %s4 = inlined_call_operand.vmem [shape: f32[1,256], index: 4, kind: input, shape index: {}]
  %s5 = inlined_call_operand.hbm [shape: f32[8,256], index: 5, kind: output, shape index: {}]
  %s6 = sld [smem:[#allocation0]]
  $region30: #{neural_network_forward.5} parent=0
    _
  %s8 = ssub.s32 1, %s6
  %s9 = scalar_select 0, %s8, %s6
  $region1: #{neural_network_forward.5} parent=0
    #allocation2 [shape = 'u8[8192]{0}', space=vmem, size = 0x2000, scoped, tag = 'output window, operand 0, single buffered']
    #allocation3 [shape = 's32[1]{0}', space=sflag, size = 0x4, scoped, tag = 'scoped memory for neural_network_forward.5']
    %10 = vsyncpa [#allocation3], 0
    // Predicated region
    $region2: #{neural_network_forward.5} parent=1 // pred_check
      _
    $region3: #{neural_network_forward.5} parent=1 // pred_check_branch
      %12 = sbr.rel (0) target = $region5
    $region4: #{neural_network_forward.5} parent=1 // pred_region
      _
    $region5: #{neural_network_forward.5} parent=1 // pred_fallthru
      _
    // Predicated region
    $region6: #{neural_network_forward.5} parent=1 // pred_check
      _
    $region7: #{neural_network_forward.5} parent=1 // pred_check_branch
      %14 = sbr.rel (0) target = $region9
    $region8: #{neural_network_forward.5} parent=1 // pred_region
      _
    $region9: #{neural_network_forward.5} parent=1 // pred_fallthru
      _
    // Predicated region
    $region10: #{neural_network_forward.5} parent=1 // pred_check
      _
    $region11: #{neural_network_forward.5} parent=1 // pred_check_branch
      %16 = sbr.rel (0) target = $region13
    $region12: #{neural_network_forward.5} parent=1 // pred_region
      _
    $region13: #{neural_network_forward.5} parent=1 // pred_fallthru
      _
    // Predicated region
    $region14: #{neural_network_forward.5} parent=1 // pred_check
      _
    $region15: #{neural_network_forward.5} parent=1 // pred_check_branch
      %18 = sbr.rel (0) target = $region17
    $region16: #{neural_network_forward.5} parent=1 // pred_region
      _
    $region17: #{neural_network_forward.5} parent=1 // pred_fallthru
      _
    // Predicated region
    $region18: #{neural_network_forward.5} parent=1 // pred_check
      _
    $region19: #{neural_network_forward.5} parent=1 // pred_check_branch
      %20 = sbr.rel (0) target = $region21
    $region20: #{neural_network_forward.5} parent=1 // pred_region
      _
    $region21: #{neural_network_forward.5} parent=1 // pred_fallthru
      _
    %v21 = vld [vmem:[%s1] sm:$0x3]
    %v22 = vmul.f32 %v21, 0.125
    %v23 = vld [vmem:[%s2] sm:$0x3]
    %v24 = vmul.f32 %v23, 0.125
    %v25 = vmul.f32 %v22, %v22
    %v26 = vsub.f32 %v24, %v25
    %v27 = vld [vmem:[%s3] sm:$0x3]
    %v28 = vadd.f32 %v26, 1e-05
    %v29 = vrsqrt.pop %v28
    %v30 = vmul.f32 %v29, %v28
    %v31 = vmul.f32 %v30, %v29
    %v32 = vmul.f32 0.5, %v31
    %v33 = vsub.f32 1.5, %v32
    %v34 = vmul.f32 %v29, %v33
    %vm35 = vweird.f32 %v28
    %vm36 = vweird.f32 %v29
    %vm37 = vmor %vm35, %vm36
    %v38 = vsel %vm37, %v29, %v34
    %v39 = vmul.f32 %v27, %v38
    %v40 = vld [vmem:[%s4] sm:$0x3]
    %v41 = vmul.f32 %v22, %v39
    %v42 = vsub.f32 %v40, %v41
    %v43 = vld [vmem:[%s0] sm:$0xff]
    %v44 = vld [vmem:[%s0 + $0x8] sm:$0xff]
    %v46 = vperm.slane %v39, 0
    %v47 = vperm.slane %v39, 1
    %v50 = vmul.f32 %v43, %v46
    %v51 = vmul.f32 %v44, %v47
    %v53 = vperm.slane %v42, 0
    %v54 = vperm.slane %v42, 1
    %v57 = vadd.f32 %v50, %v53
    %v58 = vadd.f32 %v51, %v54
    %59 = vst [vmem:[#allocation2] sm:$0xff] %v57
    %60 = vst [vmem:[#allocation2 + $0x8] sm:$0xff] %v58
    // Predicated region
    $region22: #{neural_network_forward.5} parent=1 // pred_check
      _
    $region23: #{neural_network_forward.5} parent=1 // pred_check_branch
      %62 = sbr.rel (0) target = $region25
    $region24: #{neural_network_forward.5} parent=1 // pred_region
      %64 = vsyncadd [#allocation3], 0
      %s66 = sshll.u32 [#allocation2], 4
      %s67 = int_to_ptr.vmem [resolvable:$true] %s66
      %s68 = sshll.u32 %s5, 4
      %s69 = int_to_ptr.hbm [resolvable:$true] %s68
      %71 = dma.vmem_to_hbm [thread:$0]  %s67, 256, %s69, [#allocation3]
    $region25: #{neural_network_forward.5} parent=1 // pred_fallthru
      _
    // Predicated region
    $region26: #{neural_network_forward.5} parent=1 // pred_check
      _
    $region27: #{neural_network_forward.5} parent=1 // pred_check_branch
      %73 = sbr.rel (0) target = $region29
    $region28: #{neural_network_forward.5} parent=1 // pred_region
      %75 = dma.done [#allocation3], 256
    $region29: #{neural_network_forward.5} parent=1 // pred_fallthru
      _
    %76 = vsyncpa [#allocation3], 1

// kernel: neural_network_forward.3
$region0: #{neural_network_forward.3}
  #allocation0 [shape = 'u32[]', space=smem, size = 0x4, offset = 0x4, fixed_abs, tag = 'smem constant byte address 0x4 - core index']
  #allocation1 [shape = 'u32[72,128]{1,0:T(1,128)}', space=vmem, size = 0x9000, scoped, tag = 'internal scratch']
  %s0 = inlined_call_operand.vmem [shape: f32[8,128], index: 0, kind: input, shape index: {}]
  %s1 = inlined_call_operand.vmem [shape: f32[128,256], index: 1, kind: input, shape index: {}]
  %s2 = inlined_call_operand.vmem [shape: f32[8,256], index: 2, kind: output, shape index: {0}]
  %s3 = inlined_call_operand.vmem [shape: f32[1,256], index: 3, kind: output, shape index: {1}]
  %s4 = inlined_call_operand.vmem [shape: f32[1,256], index: 4, kind: output, shape index: {2}]
  %5 = xla_tuple %s2, %s3, %s4
  %s6 = sld [smem:[#allocation0]]
  $region38: #{neural_network_forward.3} parent=0
    _
  %s8 = ssub.s32 1, %s6
  %s9 = scalar_select 0, %s8, %s6
  // Predicated region
  $region2: #{neural_network_forward.3} parent=0 // pred_check
    _
  $region3: #{neural_network_forward.3} parent=0 // pred_check_branch
    %11 = sbr.rel (0) target = $region5
  $region4: #{neural_network_forward.3} parent=0 // pred_region
    _
  $region5: #{neural_network_forward.3} parent=0 // pred_fallthru
    _
  // Predicated region
  $region6: #{neural_network_forward.3} parent=0 // pred_check
    _
  $region7: #{neural_network_forward.3} parent=0 // pred_check_branch
    %13 = sbr.rel (0) target = $region9
  $region8: #{neural_network_forward.3} parent=0 // pred_region
    _
  $region9: #{neural_network_forward.3} parent=0 // pred_fallthru
    _
  %p14 = scmp.eq.s32.totalorder 0, 0
  // Predicated region
  $region10: #{neural_network_forward.3} parent=0 // pred_check
    %p15 = pneg %p14
  $region11: #{neural_network_forward.3} parent=0 // pred_check_branch
    %17 = sbr.rel (%p15) target = $region13
  $region12: #{neural_network_forward.3} parent=0 // pred_region
    %v18 = vlaneseq
    %vm19 = vcmp.ge.s32.totalorder %v18, 0
    %vm20 = vcmp.lt.s32.totalorder %v18, 256
    %vm21 = vmand %vm19, %vm20
    %22 = vst.msk [vmem:[%s3] sm:$0x3] %vm21, 0.0
    %23 = vst.msk [vmem:[%s4] sm:$0x3] %vm21, 0.0
  $region13: #{neural_network_forward.3} parent=0 // pred_fallthru
    _
  %v24 = vld [vmem:[%s0] sm:$0xff]
  %v25 = vld [vmem:[%s1] sm:$0xff]
  %v26 = vld [vmem:[%s1 + $0x8] sm:$0xff]
  %v27 = vld [vmem:[%s1 + $0x10] sm:$0xff]
  %v28 = vld [vmem:[%s1 + $0x18] sm:$0xff]
  %v29 = vld [vmem:[%s1 + $0x20] sm:$0xff]
  %v30 = vld [vmem:[%s1 + $0x28] sm:$0xff]
  %v31 = vld [vmem:[%s1 + $0x30] sm:$0xff]
  %v32 = vld [vmem:[%s1 + $0x38] sm:$0xff]
  %v33 = vld [vmem:[%s1 + $0x40] sm:$0xff]
  %v34 = vld [vmem:[%s1 + $0x48] sm:$0xff]
  %v35 = vld [vmem:[%s1 + $0x50] sm:$0xff]
  %v36 = vld [vmem:[%s1 + $0x58] sm:$0xff]
  %v37 = vld [vmem:[%s1 + $0x60] sm:$0xff]
  %v38 = vld [vmem:[%s1 + $0x68] sm:$0xff]
  %v39 = vld [vmem:[%s1 + $0x70] sm:$0xff]
  %v40 = vld [vmem:[%s1 + $0x78] sm:$0xff]
  %v41 = vld [vmem:[%s1 + $0x80] sm:$0xff]
  %v42 = vld [vmem:[%s1 + $0x88] sm:$0xff]
  %v43 = vld [vmem:[%s1 + $0x90] sm:$0xff]
  %v44 = vld [vmem:[%s1 + $0x98] sm:$0xff]
  %v45 = vld [vmem:[%s1 + $0xa0] sm:$0xff]
  %v46 = vld [vmem:[%s1 + $0xa8] sm:$0xff]
  %v47 = vld [vmem:[%s1 + $0xb0] sm:$0xff]
  %v48 = vld [vmem:[%s1 + $0xb8] sm:$0xff]
  %v49 = vld [vmem:[%s1 + $0xc0] sm:$0xff]
  %v50 = vld [vmem:[%s1 + $0xc8] sm:$0xff]
  %v51 = vld [vmem:[%s1 + $0xd0] sm:$0xff]
  %v52 = vld [vmem:[%s1 + $0xd8] sm:$0xff]
  %v53 = vld [vmem:[%s1 + $0xe0] sm:$0xff]
  %v54 = vld [vmem:[%s1 + $0xe8] sm:$0xff]
  %v55 = vld [vmem:[%s1 + $0xf0] sm:$0xff]
  %v56 = vld [vmem:[%s1 + $0xf8] sm:$0xff]
  %57 = vmatpush.msra.mxu0 %v55
  %58 = vmatpush.msra.mxu0 %v53
  %59 = vmatpush.msra.mxu0 %v51
  %60 = vmatpush.msra.mxu0 %v49
  %61 = vmatpush.msra.mxu0 %v47
  %62 = vmatpush.msra.mxu0 %v45
  %63 = vmatpush.msra.mxu0 %v43
  %64 = vmatpush.msra.mxu0 %v41
  %65 = vmatpush.msra.mxu0 %v39
  %66 = vmatpush.msra.mxu0 %v37
  %67 = vmatpush.msra.mxu0 %v35
  %68 = vmatpush.msra.mxu0 %v33
  %69 = vmatpush.msra.mxu0 %v31
  %70 = vmatpush.msra.mxu0 %v29
  %71 = vmatpush.msra.mxu0 %v27
  %72 = vmatpush.msra.mxu0 %v25
  %73 = vmatmul.f32.gmra.mxu0 %v24
  %v74 = vpop.f32.mrf.mxu0
  %v75 = vadd.f32 0.0, %v74
  %76 = vdwg.mxu0
  %77 = vmatpush.msra.mxu0 %v56
  %78 = vmatpush.msra.mxu0 %v54
  %79 = vmatpush.msra.mxu0 %v52
  %80 = vmatpush.msra.mxu0 %v50
  %81 = vmatpush.msra.mxu0 %v48
  %82 = vmatpush.msra.mxu0 %v46
  %83 = vmatpush.msra.mxu0 %v44
  %84 = vmatpush.msra.mxu0 %v42
  %85 = vmatpush.msra.mxu0 %v40
  %86 = vmatpush.msra.mxu0 %v38
  %87 = vmatpush.msra.mxu0 %v36
  %88 = vmatpush.msra.mxu0 %v34
  %89 = vmatpush.msra.mxu0 %v32
  %90 = vmatpush.msra.mxu0 %v30
  %91 = vmatpush.msra.mxu0 %v28
  %92 = vmatpush.msra.mxu0 %v26
  %93 = vmatmul.f32.gmra.mxu0 %v24
  %v94 = vpop.f32.mrf.mxu0
  %v95 = vadd.f32 0.0, %v94
  %96 = vdwg.mxu0
  %97 = vst [vmem:[%s2] sm:$0xff] %v75
  %98 = vst [vmem:[%s2 + $0x8] sm:$0xff] %v95
  %v99 = vld [vmem:[%s3] sm:$0x3]
  %v100 = vrot.slane %v75, 4
  %v101 = vadd.f32 %v75, %v100
  %v102 = vrot.slane %v101, 2
  %v103 = vadd.f32 %v101, %v102
  %v104 = vrot.slane %v103, 1
  %v105 = vadd.f32 %v103, %v104
  %v106 = vrot.slane %v95, 4
  %v107 = vadd.f32 %v95, %v106
  %v108 = vrot.slane %v107, 2
  %v109 = vadd.f32 %v107, %v108
  %v110 = vrot.slane %v109, 1
  %v111 = vadd.f32 %v109, %v110
  %v114 = vrot.slane %v111, 7
  %vm115 = vcmask 1040384
  %v116 = vsel %vm115, %v105, %v114
  %v118 = vadd.f32 %v99, %v116
  %v119 = vlaneseq
  %vm120 = vcmp.ge.s32.totalorder %v119, 0
  %vm121 = vcmp.lt.s32.totalorder %v119, 256
  %vm122 = vmand %vm120, %vm121
  %123 = vst.msk [vmem:[%s3] sm:$0x3] %vm122, %v118
  %v124 = vld [vmem:[%s4] sm:$0x3]
  %v125 = vmul.f32 %v75, %v75
  %v126 = vmul.f32 %v95, %v95
  %v127 = vrot.slane %v125, 4
  %v128 = vadd.f32 %v125, %v127
  %v129 = vrot.slane %v128, 2
  %v130 = vadd.f32 %v128, %v129
  %v131 = vrot.slane %v130, 1
  %v132 = vadd.f32 %v130, %v131
  %v133 = vrot.slane %v126, 4
  %v134 = vadd.f32 %v126, %v133
  %v135 = vrot.slane %v134, 2
  %v136 = vadd.f32 %v134, %v135
  %v137 = vrot.slane %v136, 1
  %v138 = vadd.f32 %v136, %v137
  %v141 = vrot.slane %v138, 7
  %v142 = vsel %vm115, %v132, %v141
  %v144 = vadd.f32 %v124, %v142
  %145 = vst.msk [vmem:[%s4] sm:$0x3] %vm122, %v144
  // Predicated region
  $region14: #{neural_network_forward.3} parent=0 // pred_check
    _
  $region15: #{neural_network_forward.3} parent=0 // pred_check_branch
    %147 = sbr.rel (0) target = $region17
  $region16: #{neural_network_forward.3} parent=0 // pred_region
    _
  $region17: #{neural_network_forward.3} parent=0 // pred_fallthru
    _
  // Predicated region
  $region18: #{neural_network_forward.3} parent=0 // pred_check
    _
  $region19: #{neural_network_forward.3} parent=0 // pred_check_branch
    %149 = sbr.rel (0) target = $region21
  $region20: #{neural_network_forward.3} parent=0 // pred_region
    _
  $region21: #{neural_network_forward.3} parent=0 // pred_fallthru
    _
  // Predicated region
  $region22: #{neural_network_forward.3} parent=0 // pred_check
    _
  $region23: #{neural_network_forward.3} parent=0 // pred_check_branch
    %151 = sbr.rel (0) target = $region25
  $region24: #{neural_network_forward.3} parent=0 // pred_region
    _
  $region25: #{neural_network_forward.3} parent=0 // pred_fallthru
    _
  // Predicated region
  $region26: #{neural_network_forward.3} parent=0 // pred_check
    _
  $region27: #{neural_network_forward.3} parent=0 // pred_check_branch
    %153 = sbr.rel (0) target = $region29
  $region28: #{neural_network_forward.3} parent=0 // pred_region
    _
  $region29: #{neural_network_forward.3} parent=0 // pred_fallthru
    _
  // Predicated region
  $region30: #{neural_network_forward.3} parent=0 // pred_check
    _
  $region31: #{neural_network_forward.3} parent=0 // pred_check_branch
    %155 = sbr.rel (0) target = $region33
  $region32: #{neural_network_forward.3} parent=0 // pred_region
    _
  $region33: #{neural_network_forward.3} parent=0 // pred_fallthru
    _
  // Predicated region
  $region34: #{neural_network_forward.3} parent=0 // pred_check
    _
  $region35: #{neural_network_forward.3} parent=0 // pred_check_branch
    %157 = sbr.rel (0) target = $region37
  $region36: #{neural_network_forward.3} parent=0 // pred_region
    _
  $region37: #{neural_network_forward.3} parent=0 // pred_fallthru
    _

// kernel: neural_network_forward.4
$region0: #{neural_network_forward.4}
  #allocation0 [shape = 'u32[]', space=smem, size = 0x4, offset = 0x4, fixed_abs, tag = 'smem constant byte address 0x4 - core index']
  #allocation1 [shape = 'u32[72,128]{1,0:T(1,128)}', space=vmem, size = 0x9000, scoped, tag = 'internal scratch']
  %s0 = inlined_call_operand.vmem [shape: f32[8,256], index: 0, kind: input, shape index: {}]
  %s1 = inlined_call_operand.vmem [shape: f32[1,256], index: 1, kind: input, shape index: {}]
  %s2 = inlined_call_operand.vmem [shape: f32[1,256], index: 2, kind: input, shape index: {}]
  %s3 = inlined_call_operand.vmem [shape: f32[1,256], index: 3, kind: input, shape index: {}]
  %s4 = inlined_call_operand.vmem [shape: f32[1,256], index: 4, kind: input, shape index: {}]
  %s5 = inlined_call_operand.hbm [shape: f32[256,256], index: 5, kind: input, shape index: {}]
  %s6 = inlined_call_operand.vmem [shape: f32[8,256], index: 6, kind: output, shape index: {0}]
  %s7 = inlined_call_operand.vmem [shape: f32[1,256], index: 7, kind: output, shape index: {1}]
  %s8 = inlined_call_operand.vmem [shape: f32[1,256], index: 8, kind: output, shape index: {2}]
  %9 = xla_tuple %s6, %s7, %s8
  %s10 = sld [smem:[#allocation0]]
  $region58: #{neural_network_forward.4} parent=0
    _
  %s12 = ssub.s32 1, %s10
  %s13 = scalar_select 0, %s12, %s10
  $region1: #{neural_network_forward.4} parent=0
    #allocation2 [shape = 'u8[262144]{0}', space=vmem, size = 0x40000, scoped, tag = 'input window, operand 5, single buffered']
    #allocation3 [shape = 's32[1]{0}', space=sflag, size = 0x4, scoped, tag = 'scoped memory for neural_network_forward.4']
    %14 = vsyncpa [#allocation3], 0
    // Predicated region
    $region2: #{neural_network_forward.4} parent=1 // pred_check
      _
    $region3: #{neural_network_forward.4} parent=1 // pred_check_branch
      %16 = sbr.rel (0) target = $region5
    $region4: #{neural_network_forward.4} parent=1 // pred_region
      _
    $region5: #{neural_network_forward.4} parent=1 // pred_fallthru
      _
    // Predicated region
    $region6: #{neural_network_forward.4} parent=1 // pred_check
      _
    $region7: #{neural_network_forward.4} parent=1 // pred_check_branch
      %18 = sbr.rel (0) target = $region9
    $region8: #{neural_network_forward.4} parent=1 // pred_region
      _
    $region9: #{neural_network_forward.4} parent=1 // pred_fallthru
      _
    // Predicated region
    $region10: #{neural_network_forward.4} parent=1 // pred_check
      _
    $region11: #{neural_network_forward.4} parent=1 // pred_check_branch
      %20 = sbr.rel (0) target = $region13
    $region12: #{neural_network_forward.4} parent=1 // pred_region
      _
    $region13: #{neural_network_forward.4} parent=1 // pred_fallthru
      _
    // Predicated region
    $region14: #{neural_network_forward.4} parent=1 // pred_check
      _
    $region15: #{neural_network_forward.4} parent=1 // pred_check_branch
      %22 = sbr.rel (0) target = $region17
    $region16: #{neural_network_forward.4} parent=1 // pred_region
      _
    $region17: #{neural_network_forward.4} parent=1 // pred_fallthru
      _
    // Predicated region
    $region18: #{neural_network_forward.4} parent=1 // pred_check
      _
    $region19: #{neural_network_forward.4} parent=1 // pred_check_branch
      %24 = sbr.rel (0) target = $region21
    $region20: #{neural_network_forward.4} parent=1 // pred_region
      _
    $region21: #{neural_network_forward.4} parent=1 // pred_fallthru
      _
    // Predicated region
    $region22: #{neural_network_forward.4} parent=1 // pred_check
      _
    $region23: #{neural_network_forward.4} parent=1 // pred_check_branch
      %26 = sbr.rel (0) target = $region25
    $region24: #{neural_network_forward.4} parent=1 // pred_region
      %28 = vsyncadd [#allocation3], 0
      %s29 = sshll.u32 %s5, 4
      %s30 = int_to_ptr.hbm [resolvable:$true] %s29
      %s31 = sshll.u32 [#allocation2], 4
      %s32 = int_to_ptr.vmem [resolvable:$true] %s31
      %37 = dma.hbm_to_vmem [thread:$0]  %s30, 8192, %s32, [#allocation3], 256, 256, 16
    $region25: #{neural_network_forward.4} parent=1 // pred_fallthru
      _
    // Predicated region
    $region26: #{neural_network_forward.4} parent=1 // pred_check
      _
    $region27: #{neural_network_forward.4} parent=1 // pred_check_branch
      %39 = sbr.rel (0) target = $region29
    $region28: #{neural_network_forward.4} parent=1 // pred_region
      %41 = dma.done [#allocation3], 8192
    $region29: #{neural_network_forward.4} parent=1 // pred_fallthru
      _
    %p42 = scmp.eq.s32.totalorder 0, 0
    // Predicated region
    $region30: #{neural_network_forward.4} parent=1 // pred_check
      %p43 = pneg %p42
    $region31: #{neural_network_forward.4} parent=1 // pred_check_branch
      %45 = sbr.rel (%p43) target = $region33
    $region32: #{neural_network_forward.4} parent=1 // pred_region
      %v46 = vlaneseq
      %vm47 = vcmp.ge.s32.totalorder %v46, 0
      %vm48 = vcmp.lt.s32.totalorder %v46, 256
      %vm49 = vmand %vm47, %vm48
      %50 = vst.msk [vmem:[%s7] sm:$0x3] %vm49, 0.0
      %51 = vst.msk [vmem:[%s8] sm:$0x3] %vm49, 0.0
    $region33: #{neural_network_forward.4} parent=1 // pred_fallthru
      _
    %v52 = vld [vmem:[%s1] sm:$0x3]
    %v53 = vmul.f32 %v52, 0.125
    %v54 = vld [vmem:[%s2] sm:$0x3]
    %v55 = vmul.f32 %v54, 0.125
    %v56 = vmul.f32 %v53, %v53
    %v57 = vsub.f32 %v55, %v56
    %v58 = vld [vmem:[%s3] sm:$0x3]
    %v59 = vadd.f32 %v57, 1e-05
    %v60 = vrsqrt.pop %v59
    %v61 = vmul.f32 %v60, %v59
    %v62 = vmul.f32 %v61, %v60
    %v63 = vmul.f32 0.5, %v62
    %v64 = vsub.f32 1.5, %v63
    %v65 = vmul.f32 %v60, %v64
    %vm66 = vweird.f32 %v59
    %vm67 = vweird.f32 %v60
    %vm68 = vmor %vm66, %vm67
    %v69 = vsel %vm68, %v60, %v65
    %v70 = vmul.f32 %v58, %v69
    %v71 = vld [vmem:[%s4] sm:$0x3]
    %v72 = vmul.f32 %v53, %v70
    %v73 = vsub.f32 %v71, %v72
    %v74 = vld [vmem:[%s0] sm:$0xff]
    %v75 = vld [vmem:[%s0 + $0x8] sm:$0xff]
    %v77 = vperm.slane %v70, 0
    %v78 = vperm.slane %v70, 1
    %v81 = vmul.f32 %v74, %v77
    %v82 = vmul.f32 %v75, %v78
    %v84 = vperm.slane %v73, 0
    %v85 = vperm.slane %v73, 1
    %v88 = vadd.f32 %v81, %v84
    %v89 = vadd.f32 %v82, %v85
    %v90 = vmax.f32 %v88, 0.0
    %v91 = vmax.f32 %v89, 0.0
    %v92 = vld [vmem:[#allocation2] sm:$0xff]
    %v93 = vld [vmem:[#allocation2 + $0x8] sm:$0xff]
    %v94 = vld [vmem:[#allocation2 + $0x10] sm:$0xff]
    %v95 = vld [vmem:[#allocation2 + $0x18] sm:$0xff]
    %v96 = vld [vmem:[#allocation2 + $0x20] sm:$0xff]
    %v97 = vld [vmem:[#allocation2 + $0x28] sm:$0xff]
    %v98 = vld [vmem:[#allocation2 + $0x30] sm:$0xff]
    %v99 = vld [vmem:[#allocation2 + $0x38] sm:$0xff]
    %v100 = vld [vmem:[#allocation2 + $0x40] sm:$0xff]
    %v101 = vld [vmem:[#allocation2 + $0x48] sm:$0xff]
    %v102 = vld [vmem:[#allocation2 + $0x50] sm:$0xff]
    %v103 = vld [vmem:[#allocation2 + $0x58] sm:$0xff]
    %v104 = vld [vmem:[#allocation2 + $0x60] sm:$0xff]
    %v105 = vld [vmem:[#allocation2 + $0x68] sm:$0xff]
    %v106 = vld [vmem:[#allocation2 + $0x70] sm:$0xff]
    %v107 = vld [vmem:[#allocation2 + $0x78] sm:$0xff]
    %v108 = vld [vmem:[#allocation2 + $0x80] sm:$0xff]
    %v109 = vld [vmem:[#allocation2 + $0x88] sm:$0xff]
    %v110 = vld [vmem:[#allocation2 + $0x90] sm:$0xff]
    %v111 = vld [vmem:[#allocation2 + $0x98] sm:$0xff]
    %v112 = vld [vmem:[#allocation2 + $0xa0] sm:$0xff]
    %v113 = vld [vmem:[#allocation2 + $0xa8] sm:$0xff]
    %v114 = vld [vmem:[#allocation2 + $0xb0] sm:$0xff]
    %v115 = vld [vmem:[#allocation2 + $0xb8] sm:$0xff]
    %v116 = vld [vmem:[#allocation2 + $0xc0] sm:$0xff]
    %v117 = vld [vmem:[#allocation2 + $0xc8] sm:$0xff]
    %v118 = vld [vmem:[#allocation2 + $0xd0] sm:$0xff]
    %v119 = vld [vmem:[#allocation2 + $0xd8] sm:$0xff]
    %v120 = vld [vmem:[#allocation2 + $0xe0] sm:$0xff]
    %v121 = vld [vmem:[#allocation2 + $0xe8] sm:$0xff]
    %v122 = vld [vmem:[#allocation2 + $0xf0] sm:$0xff]
    %v123 = vld [vmem:[#allocation2 + $0xf8] sm:$0xff]
    %v124 = vld [vmem:[#allocation2 + $0x100] sm:$0xff]
    %v125 = vld [vmem:[#allocation2 + $0x108] sm:$0xff]
    %v126 = vld [vmem:[#allocation2 + $0x110] sm:$0xff]
    %v127 = vld [vmem:[#allocation2 + $0x118] sm:$0xff]
    %v128 = vld [vmem:[#allocation2 + $0x120] sm:$0xff]
    %v129 = vld [vmem:[#allocation2 + $0x128] sm:$0xff]
    %v130 = vld [vmem:[#allocation2 + $0x130] sm:$0xff]
    %v131 = vld [vmem:[#allocation2 + $0x138] sm:$0xff]
    %v132 = vld [vmem:[#allocation2 + $0x140] sm:$0xff]
    %v133 = vld [vmem:[#allocation2 + $0x148] sm:$0xff]
    %v134 = vld [vmem:[#allocation2 + $0x150] sm:$0xff]
    %v135 = vld [vmem:[#allocation2 + $0x158] sm:$0xff]
    %v136 = vld [vmem:[#allocation2 + $0x160] sm:$0xff]
    %v137 = vld [vmem:[#allocation2 + $0x168] sm:$0xff]
    %v138 = vld [vmem:[#allocation2 + $0x170] sm:$0xff]
    %v139 = vld [vmem:[#allocation2 + $0x178] sm:$0xff]
    %v140 = vld [vmem:[#allocation2 + $0x180] sm:$0xff]
    %v141 = vld [vmem:[#allocation2 + $0x188] sm:$0xff]
    %v142 = vld [vmem:[#allocation2 + $0x190] sm:$0xff]
    %v143 = vld [vmem:[#allocation2 + $0x198] sm:$0xff]
    %v144 = vld [vmem:[#allocation2 + $0x1a0] sm:$0xff]
    %v145 = vld [vmem:[#allocation2 + $0x1a8] sm:$0xff]
    %v146 = vld [vmem:[#allocation2 + $0x1b0] sm:$0xff]
    %v147 = vld [vmem:[#allocation2 + $0x1b8] sm:$0xff]
    %v148 = vld [vmem:[#allocation2 + $0x1c0] sm:$0xff]
    %v149 = vld [vmem:[#allocation2 + $0x1c8] sm:$0xff]
    %v150 = vld [vmem:[#allocation2 + $0x1d0] sm:$0xff]
    %v151 = vld [vmem:[#allocation2 + $0x1d8] sm:$0xff]
    %v152 = vld [vmem:[#allocation2 + $0x1e0] sm:$0xff]
    %v153 = vld [vmem:[#allocation2 + $0x1e8] sm:$0xff]
    %v154 = vld [vmem:[#allocation2 + $0x1f0] sm:$0xff]
    %v155 = vld [vmem:[#allocation2 + $0x1f8] sm:$0xff]
    %156 = vmatpush.msra.mxu0 %v122
    %157 = vmatpush.msra.mxu0 %v120
    %158 = vmatpush.msra.mxu0 %v118
    %159 = vmatpush.msra.mxu0 %v116
    %160 = vmatpush.msra.mxu0 %v114
    %161 = vmatpush.msra.mxu0 %v112
    %162 = vmatpush.msra.mxu0 %v110
    %163 = vmatpush.msra.mxu0 %v108
    %164 = vmatpush.msra.mxu0 %v106
    %165 = vmatpush.msra.mxu0 %v104
    %166 = vmatpush.msra.mxu0 %v102
    %167 = vmatpush.msra.mxu0 %v100
    %168 = vmatpush.msra.mxu0 %v98
    %169 = vmatpush.msra.mxu0 %v96
    %170 = vmatpush.msra.mxu0 %v94
    %171 = vmatpush.msra.mxu0 %v92
    %172 = vmatmul.f32.gmra.mxu0 %v90
    %v173 = vpop.f32.mrf.mxu0
    %v174 = vadd.f32 0.0, %v173
    %175 = vdwg.mxu0
    %176 = vmatpush.msra.mxu0 %v154
    %177 = vmatpush.msra.mxu0 %v152
    %178 = vmatpush.msra.mxu0 %v150
    %179 = vmatpush.msra.mxu0 %v148
    %180 = vmatpush.msra.mxu0 %v146
    %181 = vmatpush.msra.mxu0 %v144
    %182 = vmatpush.msra.mxu0 %v142
    %183 = vmatpush.msra.mxu0 %v140
    %184 = vmatpush.msra.mxu0 %v138
    %185 = vmatpush.msra.mxu0 %v136
    %186 = vmatpush.msra.mxu0 %v134
    %187 = vmatpush.msra.mxu0 %v132
    %188 = vmatpush.msra.mxu0 %v130
    %189 = vmatpush.msra.mxu0 %v128
    %190 = vmatpush.msra.mxu0 %v126
    %191 = vmatpush.msra.mxu0 %v124
    %192 = vmatmul.f32.gmra.mxu0 %v91
    %v193 = vpop.f32.mrf.mxu0
    %v194 = vadd.f32 %v174, %v193
    %195 = vdwg.mxu0
    %196 = vmatpush.msra.mxu0 %v123
    %197 = vmatpush.msra.mxu0 %v121
    %198 = vmatpush.msra.mxu0 %v119
    %199 = vmatpush.msra.mxu0 %v117
    %200 = vmatpush.msra.mxu0 %v115
    %201 = vmatpush.msra.mxu0 %v113
    %202 = vmatpush.msra.mxu0 %v111
    %203 = vmatpush.msra.mxu0 %v109
    %204 = vmatpush.msra.mxu0 %v107
    %205 = vmatpush.msra.mxu0 %v105
    %206 = vmatpush.msra.mxu0 %v103
    %207 = vmatpush.msra.mxu0 %v101
    %208 = vmatpush.msra.mxu0 %v99
    %209 = vmatpush.msra.mxu0 %v97
    %210 = vmatpush.msra.mxu0 %v95
    %211 = vmatpush.msra.mxu0 %v93
    %212 = vmatmul.f32.gmra.mxu0 %v90
    %v213 = vpop.f32.mrf.mxu0
    %v214 = vadd.f32 0.0, %v213
    %215 = vdwg.mxu0
    %216 = vmatpush.msra.mxu0 %v155
    %217 = vmatpush.msra.mxu0 %v153
    %218 = vmatpush.msra.mxu0 %v151
    %219 = vmatpush.msra.mxu0 %v149
    %220 = vmatpush.msra.mxu0 %v147
    %221 = vmatpush.msra.mxu0 %v145
    %222 = vmatpush.msra.mxu0 %v143
    %223 = vmatpush.msra.mxu0 %v141
    %224 = vmatpush.msra.mxu0 %v139
    %225 = vmatpush.msra.mxu0 %v137
    %226 = vmatpush.msra.mxu0 %v135
    %227 = vmatpush.msra.mxu0 %v133
    %228 = vmatpush.msra.mxu0 %v131
    %229 = vmatpush.msra.mxu0 %v129
    %230 = vmatpush.msra.mxu0 %v127
    %231 = vmatpush.msra.mxu0 %v125
    %232 = vmatmul.f32.gmra.mxu0 %v91
    %v233 = vpop.f32.mrf.mxu0
    %v234 = vadd.f32 %v214, %v233
    %235 = vdwg.mxu0
    %236 = vst [vmem:[%s6] sm:$0xff] %v194
    %237 = vst [vmem:[%s6 + $0x8] sm:$0xff] %v234
    %v238 = vld [vmem:[%s7] sm:$0x3]
    %v239 = vrot.slane %v194, 4
    %v240 = vadd.f32 %v194, %v239
    %v241 = vrot.slane %v240, 2
    %v242 = vadd.f32 %v240, %v241
    %v243 = vrot.slane %v242, 1
    %v244 = vadd.f32 %v242, %v243
    %v245 = vrot.slane %v234, 4
    %v246 = vadd.f32 %v234, %v245
    %v247 = vrot.slane %v246, 2
    %v248 = vadd.f32 %v246, %v247
    %v249 = vrot.slane %v248, 1
    %v250 = vadd.f32 %v248, %v249
    %v253 = vrot.slane %v250, 7
    %vm254 = vcmask 1040384
    %v255 = vsel %vm254, %v244, %v253
    %v257 = vadd.f32 %v238, %v255
    %v258 = vlaneseq
    %vm259 = vcmp.ge.s32.totalorder %v258, 0
    %vm260 = vcmp.lt.s32.totalorder %v258, 256
    %vm261 = vmand %vm259, %vm260
    %262 = vst.msk [vmem:[%s7] sm:$0x3] %vm261, %v257
    %v263 = vld [vmem:[%s8] sm:$0x3]
    %v264 = vmul.f32 %v194, %v194
    %v265 = vmul.f32 %v234, %v234
    %v266 = vrot.slane %v264, 4
    %v267 = vadd.f32 %v264, %v266
    %v268 = vrot.slane %v267, 2
    %v269 = vadd.f32 %v267, %v268
    %v270 = vrot.slane %v269, 1
    %v271 = vadd.f32 %v269, %v270
    %v272 = vrot.slane %v265, 4
    %v273 = vadd.f32 %v265, %v272
    %v274 = vrot.slane %v273, 2
    %v275 = vadd.f32 %v273, %v274
    %v276 = vrot.slane %v275, 1
    %v277 = vadd.f32 %v275, %v276
    %v280 = vrot.slane %v277, 7
    %v281 = vsel %vm254, %v271, %v280
    %v283 = vadd.f32 %v263, %v281
    %284 = vst.msk [vmem:[%s8] sm:$0x3] %vm261, %v283
    // Predicated region
    $region34: #{neural_network_forward.4} parent=1 // pred_check
      _
    $region35: #{neural_network_forward.4} parent=1 // pred_check_branch
      %286 = sbr.rel (0) target = $region37
    $region36: #{neural_network_forward.4} parent=1 // pred_region
      _
    $region37: #{neural_network_forward.4} parent=1 // pred_fallthru
      _
    // Predicated region
    $region38: #{neural_network_forward.4} parent=1 // pred_check
      _
    $region39: #{neural_network_forward.4} parent=1 // pred_check_branch
      %288 = sbr.rel (0) target = $region41
    $region40: #{neural_network_forward.4} parent=1 // pred_region
      _
    $region41: #{neural_network_forward.4} parent=1 // pred_fallthru
      _
    // Predicated region
    $region42: #{neural_network_forward.4} parent=1 // pred_check
      _
    $region43: #{neural_network_forward.4} parent=1 // pred_check_branch
      %290 = sbr.rel (0) target = $region45
    $region44: #{neural_network_forward.4} parent=1 // pred_region
      _
    $region45: #{neural_network_forward.4} parent=1 // pred_fallthru
      _
    // Predicated region
    $region46: #{neural_network_forward.4} parent=1 // pred_check
      _
    $region47: #{neural_network_forward.4} parent=1 // pred_check_branch
      %292 = sbr.rel (0) target = $region49
    $region48: #{neural_network_forward.4} parent=1 // pred_region
      _
    $region49: #{neural_network_forward.4} parent=1 // pred_fallthru
      _
    // Predicated region
    $region50: #{neural_network_forward.4} parent=1 // pred_check
      _
    $region51: #{neural_network_forward.4} parent=1 // pred_check_branch
      %294 = sbr.rel (0) target = $region53
    $region52: #{neural_network_forward.4} parent=1 // pred_region
      _
    $region53: #{neural_network_forward.4} parent=1 // pred_fallthru
      _
    // Predicated region
    $region54: #{neural_network_forward.4} parent=1 // pred_check
      _
    $region55: #{neural_network_forward.4} parent=1 // pred_check_branch
      %296 = sbr.rel (0) target = $region57
    $region56: #{neural_network_forward.4} parent=1 // pred_region
      _
    $region57: #{neural_network_forward.4} parent=1 // pred_fallthru
      _
    %297 = vsyncpa [#allocation3], 1

</llo_original>
